<compile_context>
chip_gen: v7x
topology: tpu7x:2x2x1
jax: 0.10.0
libtpu: 0.0.40
codegen_flags: <defaults>
</compile_context>

<pallas_src>
import functools
import math

import jax
import jax.numpy as jnp
from jax.experimental import pallas as pl
from jax.experimental.pallas import tpu as pltpu

K = 5      # original conv kernel size
PAD = 2    # replicate padding of the original module
TAP = 3    # each upsample phase reduces to a 3x3 stencil at original resolution


def _round_up(x, m):
    return ((x + m - 1) // m) * m


def _vmem_capacity_bytes():
    """Generation-aware VMEM capacity (v7x: 64 MiB, v5e/v6e: 128 MiB)."""
    try:
        info = pltpu.get_tpu_info()
        cap = int(getattr(info, "vmem_capacity_bytes", 0))
        if cap > 0:
            return cap
    except Exception:
        pass
    return 64 * 1024 * 1024   # conservative fallback = v7x physical VMEM


def _step_vmem_bytes(th, wp, cin, cout):
    """Rough per-grid-step VMEM footprint, padded to (8,128) vreg tiling."""
    lane_cin = _round_up(cin, 128)
    lane_3cin = _round_up(TAP * cin, 128)
    lanes_out = th * wp                                   # multiple of 128 by construction
    sub = lambda v: _round_up(v, 8)
    b = 0
    b += 2 * (th + 2) * sub(wp + 2) * lane_cin * 2        # input window (x2 buffers, bf16)
    b += (th + 2) * sub(wp) * lane_3cin * 2               # cols (bf16)
    b += (th * wp) * lane_3cin * 2                        # one materialized row-tap slice
    b += sub(4 * cout) * lanes_out * 4                    # f32 accumulator
    b += 2 * sub(4 * cout) * lanes_out * 2                # output block (x2 buffers, bf16)
    b += 2 * TAP * sub(4 * cout) * lane_3cin * 2          # weights (x2 buffers, bf16)
    return int(b * 1.25)                                  # headroom for relayout temps


def _plan_tiles(h, w, cin, cout, budget):
    """Pick (row_tile, padded_width): LARGEST divisor of h whose per-step
    footprint fits `budget`, keeping the stored lane dim th*Wp a multiple of
    128 (lane-dense stores) and <= 2048 lanes (amortize per-step overhead
    without oversizing VMEM)."""
    cands = []
    for th in range(1, h + 1):
        if h % th:
            continue
        g = 128 // math.gcd(th, 128)          # need wp % g == 0 so th*wp % 128 == 0
        wp = _round_up(w, max(g, 8))          # %8 keeps the (th,wp)->th*wp fold free
        cands.append((th, wp, th * wp,
                      _step_vmem_bytes(th, wp, cin, cout) <= budget))
    pool = [c for c in cands if c[3]] or cands
    capped = [c for c in pool if c[2] <= 2048]
    if capped:
        th, wp, _, _ = max(capped, key=lambda c: (c[0], -c[1]))
    else:                                     # even th=1 exceeds 2048 lanes (huge W)
        th, wp, _, _ = min(pool, key=lambda c: (c[2], c[1]))
    return th, wp


def upconv_kernel(xw_ref, w_ref, shift_ref, o_ref, *, th, wp, cin, cout):
    """One (batch, row-tile) grid step.

    xw_ref:    (th+2, Wp+2, Cin)  bf16  ReLU'd, replicate-padded halo window
    w_ref:     (3, 4*Cout, 3*Cin) bf16  per-row-tap phase weights, BN scale folded
    shift_ref: (4*Cout, 1)        f32   BN shift (repeated over the 4 phases)
    o_ref:     (4*Cout, th*Wp)    bf16  output tile, rows (di, dj, cout),
                                        lanes (i, j); lane dim % 128 == 0
    """
    xw = xw_ref[...]                                               # (th+2, Wp+2, Cin)
    # Column taps b = 0..2, channel-minor so the row fold below keeps the minor dim.
    cols = jnp.concatenate([xw[:, b:b + wp, :] for b in range(TAP)],
                           axis=-1)                                # (th+2, Wp, 3*Cin)
    acc = jnp.zeros((4 * cout, th * wp), jnp.float32)
    for a in range(TAP):                                           # 3 accumulating MXU pushes
        rhs = cols[a:a + th].reshape(th * wp, TAP * cin)           # free fold (wp % 8 == 0)
        acc += jax.lax.dot_general(
            w_ref[a], rhs,
            dimension_numbers=(((1,), (1,)), ((), ())),            # contract 3*Cin (both last)
            preferred_element_type=jnp.float32)                    # (4*Cout, th*Wp)
    # BatchNorm2d (eval) shift; scale is already folded into w_ref.
    # TODO(synk): Dropout(0.5) is eval-mode identity; training-mode stochastic
    #             masking is intentionally not emulated.
    o_ref[...] = (acc + shift_ref[...]).astype(o_ref.dtype)


def upconv_forward(x_nchw, w_oihw, bn_scale, bn_shift):
    """x_nchw (N, Cin, H, W) f32 -> (N, Cout, 2H, 2W) f32."""
    N, Cin, H, W = x_nchw.shape
    Cout = w_oihw.shape[0]

    cap = _vmem_capacity_bytes()
    th, Wp = _plan_tiles(H, W, Cin, Cout, budget=int(cap * 0.45))
    R = H // th
    need = _step_vmem_bytes(th, Wp, Cin, Cout)
    vmem_limit = min(max(int(cap * 0.55), int(need * 1.2)), int(cap * 0.9))

    # ---- weight prep (tiny, XLA side) ------------------------------------
    # sel[d, a, k] = 1 iff 5x5 tap k of output phase d folds onto 3x3 tap a:
    #   floor((d + k - 2) / 2) == a - 1
    ph = jnp.arange(2)[:, None, None]
    t3 = jnp.arange(TAP)[None, :, None]
    t5 = jnp.arange(K)[None, None, :]
    sel = ((ph + t5 - PAD) // 2 == t3 - 1).astype(jnp.float32)        # (2, 3, 5)
    wph = jnp.einsum('dak,ebl,ockl->deocab', sel, sel,
                     w_oihw.astype(jnp.float32))                      # (2,2,Co,Ci,3,3)
    wph = wph * bn_scale.astype(jnp.float32).reshape(1, 1, Cout, 1, 1, 1)
    # rows (d, e, cout); split by row-tap a; cols (b, cin) -> (3, 4*Cout, 3*Cin)
    w_mat = jnp.transpose(wph, (4, 0, 1, 2, 5, 3)).reshape(
        TAP, 4 * Cout, TAP * Cin).astype(jnp.bfloat16)
    shift = jnp.tile(bn_shift.astype(jnp.float32), 4).reshape(4 * Cout, 1)

    # ---- input prep: ReLU + replicate-pad-by-1 + per-row-tile halo windows.
    # ReLU commutes with replicate-pad and nearest-upsample, so hoisting it here
    # (fused with the transpose/pad/cast) is exact.
    xp = jnp.maximum(jnp.transpose(x_nchw, (0, 2, 3, 1)), 0.0)        # (N, H, W, Cin)
    xp = jnp.pad(xp, ((0, 0), (1, 1), (1, 1 + (Wp - W)), (0, 0)),
                 mode='edge').astype(jnp.bfloat16)                    # (N, H+2, Wp+2, Cin)
    # Halo windows: kernel input block is O(th) rows (not the whole image);
    # auto double-buffered / prefetched by the BlockSpec pipeline.
    xwin = jnp.stack([xp[:, r * th:r * th + th + 2] for r in range(R)],
                     axis=1)                                          # (N, R, th+2, Wp+2, Cin)

    kernel = functools.partial(upconv_kernel, th=th, wp=Wp, cin=Cin, cout=Cout)
    out_flat = pl.pallas_call(
        kernel,
        out_shape=jax.ShapeDtypeStruct((N, 4 * Cout, H * Wp), jnp.bfloat16),
        grid_spec=pltpu.PrefetchScalarGridSpec(
            num_scalar_prefetch=0,
            grid=(N, R),
            in_specs=[
                pl.BlockSpec((None, None, th + 2, Wp + 2, Cin),
                             lambda n, r: (n, r, 0, 0, 0)),
                pl.BlockSpec((TAP, 4 * Cout, TAP * Cin), lambda n, r: (0, 0, 0)),
                pl.BlockSpec((4 * Cout, 1), lambda n, r: (0, 0)),
            ],
            out_specs=pl.BlockSpec((None, 4 * Cout, th * Wp),
                                   lambda n, r: (n, 0, r)),
        ),
        compiler_params=pltpu.CompilerParams(
            # No cross-step accumulation: both axes parallel so v7x's two
            # TensorCores can split the row-tile axis even when N is small.
            dimension_semantics=("parallel", "parallel"),
            vmem_limit_bytes=vmem_limit),
    )(xwin, w_mat, shift)

    # Phase de-interleave (wrapper-side layout plumbing on the final output):
    # rows (di, dj, cout), lanes (i, j)  ->  NCHW (N, Cout, 2H, 2W) f32.
    y = out_flat.reshape(N, 2, 2, Cout, H, Wp)[..., :W]
    y = jnp.transpose(y, (0, 3, 4, 1, 5, 2)).reshape(N, Cout, 2 * H, 2 * W)
    return y.astype(jnp.float32)


def reference_forward(x_nchw, w_oihw, bn_scale, bn_shift):
    """Pure-JAX f32 reference faithful to the PyTorch module (eval mode)."""
    z = jnp.maximum(x_nchw, 0.0)
    u = jnp.repeat(jnp.repeat(z, 2, axis=2), 2, axis=3)
    up = jnp.pad(u, ((0, 0), (0, 0), (PAD, PAD), (PAD, PAD)), mode='edge')
    y = jax.lax.conv_general_dilated(
        up, w_oihw, window_strides=(1, 1), padding='VALID',
        dimension_numbers=('NCHW', 'OIHW', 'NCHW'))
    return y * bn_scale.reshape(1, -1, 1, 1) + bn_shift.reshape(1, -1, 1, 1)


if __name__ == "__main__":
    key = jax.random.PRNGKey(0)
    k_x, k_w, k_g, k_b, k_m, k_v = jax.random.split(key, 6)

    N, Cin, H, W = 2, 4, 16, 16
    Cout = 8
    eps = 1e-5

    x = jax.random.normal(k_x, (N, Cin, H, W), dtype=jnp.float32)
    w = jax.random.normal(k_w, (Cout, Cin, K, K), dtype=jnp.float32) * 0.1
    gamma = 1.0 + 0.1 * jax.random.normal(k_g, (Cout,), dtype=jnp.float32)
    beta = 0.1 * jax.random.normal(k_b, (Cout,), dtype=jnp.float32)
    running_mean = 0.1 * jax.random.normal(k_m, (Cout,), dtype=jnp.float32)
    running_var = jax.random.uniform(k_v, (Cout,), dtype=jnp.float32,
                                     minval=0.5, maxval=1.5)
    bn_scale = gamma / jnp.sqrt(running_var + eps)
    bn_shift = beta - running_mean * bn_scale

    out = jax.block_until_ready(upconv_forward(x, w, bn_scale, bn_shift))
    ref = jax.block_until_ready(reference_forward(x, w, bn_scale, bn_shift))

    assert out.shape == (N, Cout, 2 * H, 2 * W), out.shape
    # Kernel uses bf16 MXU operands and a bf16 output store vs an f32 reference:
    # allow small quantization tolerance; an algorithmic error would be O(1).
    max_err = float(jnp.max(jnp.abs(out - ref)))
    assert jnp.allclose(out, ref, atol=5e-2, rtol=5e-2), max_err
    print("KERNEL_OK")
</pallas_src>

<mosaic_0001>
module attributes {stable_mosaic.version = 11 : i64} {
  func.func @upconv_kernel(%arg0: i32, %arg1: i32, %arg2: memref<1x1x18x18x4xbf16, #tpu.memory_space<vmem>>, %arg3: memref<3x32x12xbf16, #tpu.memory_space<vmem>>, %arg4: memref<32x1xf32, #tpu.memory_space<vmem>>, %arg5: memref<1x32x256xbf16, #tpu.memory_space<vmem>>) attributes {dimension_semantics = [#tpu.dimension_semantics<parallel>, #tpu.dimension_semantics<parallel>], iteration_bounds = array<i64: 2, 1>, scalar_prefetch = 0 : i64, scratch_operands = 0 : i64, tpu.core_type = #tpu.core_type<tc>, window_params = [{transform_indices = @transform_0, window_bounds = array<i64: 1, 1, 18, 18, 4>}, {pipeline_mode = #tpu.pipeline_mode<synchronous>, transform_indices = @transform_1, window_bounds = array<i64: 3, 32, 12>}, {pipeline_mode = #tpu.pipeline_mode<synchronous>, transform_indices = @transform_2, window_bounds = array<i64: 32, 1>}, {transform_indices = @transform_3, window_bounds = array<i64: 1, 32, 256>}]} {
    %c0 = arith.constant 0 : index
    %c0_0 = arith.constant 0 : index
    %c0_1 = arith.constant 0 : index
    %c0_2 = arith.constant 0 : index
    %c0_3 = arith.constant 0 : index
    %0 = vector.load %arg2[%c0, %c0_0, %c0_1, %c0_2, %c0_3] : memref<1x1x18x18x4xbf16, #tpu.memory_space<vmem>>, vector<1x1x18x18x4xbf16>
    %1 = vector.shape_cast %0 : vector<1x1x18x18x4xbf16> to vector<18x18x4xbf16>
    %2 = vector.extract_strided_slice %1 {offsets = [0, 0, 0], sizes = [18, 16, 4], strides = [1, 1, 1]} : vector<18x18x4xbf16> to vector<18x16x4xbf16>
    %3 = vector.extract_strided_slice %1 {offsets = [0, 1, 0], sizes = [18, 16, 4], strides = [1, 1, 1]} : vector<18x18x4xbf16> to vector<18x16x4xbf16>
    %4 = vector.extract_strided_slice %1 {offsets = [0, 2, 0], sizes = [18, 16, 4], strides = [1, 1, 1]} : vector<18x18x4xbf16> to vector<18x16x4xbf16>
    %5 = tpu.concatenate %2, %3, %4 in 2 : vector<18x16x4xbf16>, vector<18x16x4xbf16>, vector<18x16x4xbf16> -> vector<18x16x12xbf16>
    %cst = arith.constant 0.000000e+00 : f32
    %6 = vector.broadcast %cst : f32 to vector<32x256xf32>
    %7 = vector.extract_strided_slice %5 {offsets = [0, 0, 0], sizes = [16, 16, 12], strides = [1, 1, 1]} : vector<18x16x12xbf16> to vector<16x16x12xbf16>
    %8 = vector.shape_cast %7 : vector<16x16x12xbf16> to vector<256x12xbf16>
    %c0_4 = arith.constant 0 : index
    %c0_5 = arith.constant 0 : index
    %c0_6 = arith.constant 0 : index
    %9 = vector.load %arg3[%c0_4, %c0_5, %c0_6] : memref<3x32x12xbf16, #tpu.memory_space<vmem>>, vector<1x32x12xbf16>
    %10 = vector.shape_cast %9 : vector<1x32x12xbf16> to vector<32x12xbf16>
    %cst_7 = arith.constant dense<0.000000e+00> : vector<32x256xf32>
    %11 = tpu.matmul %10, %8, %cst_7 {dimension_numbers = #tpu.dot_dimension_numbers<[1], [1], [0], [0], [0, 0, 1, 0], [], []>} : vector<32x12xbf16>, vector<256x12xbf16>, vector<32x256xf32> -> vector<32x256xf32>
    %12 = arith.addf %6, %11 : vector<32x256xf32>
    %13 = vector.extract_strided_slice %5 {offsets = [1, 0, 0], sizes = [16, 16, 12], strides = [1, 1, 1]} : vector<18x16x12xbf16> to vector<16x16x12xbf16>
    %14 = vector.shape_cast %13 : vector<16x16x12xbf16> to vector<256x12xbf16>
    %c1 = arith.constant 1 : index
    %c0_8 = arith.constant 0 : index
    %c0_9 = arith.constant 0 : index
    %15 = vector.load %arg3[%c1, %c0_8, %c0_9] : memref<3x32x12xbf16, #tpu.memory_space<vmem>>, vector<1x32x12xbf16>
    %16 = vector.shape_cast %15 : vector<1x32x12xbf16> to vector<32x12xbf16>
    %cst_10 = arith.constant dense<0.000000e+00> : vector<32x256xf32>
    %17 = tpu.matmul %16, %14, %cst_10 {dimension_numbers = #tpu.dot_dimension_numbers<[1], [1], [0], [0], [0, 0, 1, 0], [], []>} : vector<32x12xbf16>, vector<256x12xbf16>, vector<32x256xf32> -> vector<32x256xf32>
    %18 = arith.addf %12, %17 : vector<32x256xf32>
    %19 = vector.extract_strided_slice %5 {offsets = [2, 0, 0], sizes = [16, 16, 12], strides = [1, 1, 1]} : vector<18x16x12xbf16> to vector<16x16x12xbf16>
    %20 = vector.shape_cast %19 : vector<16x16x12xbf16> to vector<256x12xbf16>
    %c2 = arith.constant 2 : index
    %c0_11 = arith.constant 0 : index
    %c0_12 = arith.constant 0 : index
    %21 = vector.load %arg3[%c2, %c0_11, %c0_12] : memref<3x32x12xbf16, #tpu.memory_space<vmem>>, vector<1x32x12xbf16>
    %22 = vector.shape_cast %21 : vector<1x32x12xbf16> to vector<32x12xbf16>
    %cst_13 = arith.constant dense<0.000000e+00> : vector<32x256xf32>
    %23 = tpu.matmul %22, %20, %cst_13 {dimension_numbers = #tpu.dot_dimension_numbers<[1], [1], [0], [0], [0, 0, 1, 0], [], []>} : vector<32x12xbf16>, vector<256x12xbf16>, vector<32x256xf32> -> vector<32x256xf32>
    %24 = arith.addf %18, %23 : vector<32x256xf32>
    %c0_14 = arith.constant 0 : index
    %c0_15 = arith.constant 0 : index
    %25 = vector.load %arg4[%c0_14, %c0_15] : memref<32x1xf32, #tpu.memory_space<vmem>>, vector<32x1xf32>
    %26 = vector.broadcast %25 : vector<32x1xf32> to vector<32x256xf32>
    %27 = arith.addf %24, %26 : vector<32x256xf32>
    %28 = arith.truncf %27 : vector<32x256xf32> to vector<32x256xbf16>
    %c0_16 = arith.constant 0 : index
    %c0_17 = arith.constant 0 : index
    %c0_18 = arith.constant 0 : index
    %29 = vector.load %arg5[%c0_16, %c0_17, %c0_18] : memref<1x32x256xbf16, #tpu.memory_space<vmem>>, vector<1x32x256xbf16>
    %30 = vector.shape_cast %29 : vector<1x32x256xbf16> to vector<32x256xbf16>
    %31 = vector.shape_cast %28 : vector<32x256xbf16> to vector<1x32x256xbf16>
    tpu.vector_store %arg5[%c0_16, %c0_17, %c0_18], %31 {strides = array<i32>} : memref<1x32x256xbf16, #tpu.memory_space<vmem>>, vector<1x32x256xbf16>,
    return
  }
  func.func @transform_0(%arg0: i32, %arg1: i32) -> (i32, i32, i32, i32, i32) {
    %c0_i32 = arith.constant 0 : i32
    %c0_i32_0 = arith.constant 0 : i32
    %c0_i32_1 = arith.constant 0 : i32
    %c0_i32_2 = arith.constant 0 : i32
    return %arg0, %arg1, %c0_i32, %c0_i32_0, %c0_i32_1 : i32, i32, i32, i32, i32
  }
  func.func @transform_1(%arg0: i32, %arg1: i32) -> (i32, i32, i32) {
    %c0_i32 = arith.constant 0 : i32
    %c0_i32_0 = arith.constant 0 : i32
    %c0_i32_1 = arith.constant 0 : i32
    %c0_i32_2 = arith.constant 0 : i32
    return %c0_i32, %c0_i32_0, %c0_i32_1 : i32, i32, i32
  }
  func.func @transform_2(%arg0: i32, %arg1: i32) -> (i32, i32) {
    %c0_i32 = arith.constant 0 : i32
    %c0_i32_0 = arith.constant 0 : i32
    %c0_i32_1 = arith.constant 0 : i32
    return %c0_i32, %c0_i32_0 : i32, i32
  }
  func.func @transform_3(%arg0: i32, %arg1: i32) -> (i32, i32, i32) {
    %c0_i32 = arith.constant 0 : i32
    %c0_i32_0 = arith.constant 0 : i32
    return %arg0, %c0_i32, %arg1 : i32, i32, i32
  }
}

</mosaic_0001>

<llo_original>
// kernel: tpu_custom_call.1
$region0: #{tpu_custom_call.1}
  #allocation0 [shape = 'u32[]', space=smem, size = 0x4, offset = 0x4, fixed_abs, tag = 'smem constant byte address 0x4 - core index']
  #allocation1 [shape = 'u32[144,128]{1,0:T(1,128)}', space=vmem, size = 0x12000, scoped, tag = 'internal scratch']
  %s0 = inlined_call_operand.vmem [shape: bf16[2,1,18,18,4], index: 0, kind: input, shape index: {}]
  %s1 = inlined_call_operand.vmem [shape: bf16[3,32,12], index: 1, kind: input, shape index: {}]
  %s2 = inlined_call_operand.vmem [shape: f32[32,1], index: 2, kind: input, shape index: {}]
  %s3 = inlined_call_operand.hbm [shape: bf16[2,32,256], index: 3, kind: output, shape index: {}]
  %s4 = sld [smem:[#allocation0]]
  $region45: #{tpu_custom_call.1} parent=0
    _
  %s6 = ssub.s32 1, %s4
  %s7 = scalar_select 0, %s6, %s4
  $region1: #{tpu_custom_call.1} parent=0
    #allocation2 [shape = 'u8[32768]{0}', space=vmem, size = 0x8000, scoped, tag = 'output window, operand 0']
    #allocation3 [shape = 's32[2]{0}', space=sflag, size = 0x8, scoped, tag = 'scoped memory for tpu_custom_call.1']
    %8 = vsyncpa [#allocation3], 0
    %s9 = scalar_lea.sflag [#allocation3], 1
    %10 = vsyncpa %s9, 0
    loop: start=0, step=1, limit=4
    $region2: #{tpu_custom_call.1} parent=1 // loop_pre_header
      _
    $region3: #{tpu_custom_call.1} parent=1 // loop_header
      %s12 = sphi 0, %s16
      %p13 = scmp.ge.s32.totalorder %s12, 4
      %s19 = sphi 0, %s31
      %s20 = sphi 0, %s27
      %s21 = sphi 0, %s19
      %s22 = sphi 0, %s20
      %s23 = sphi 0, %s21
      %s24 = sphi 0, %s22
      %s36 = sphi 0, %s38
      %s39 = sphi 0, %s36
      %s40 = sphi 0, %s39
      %s56 = sphi 0, %s40
      %s60 = sphi 0, %s60
      %s62 = sphi 0, %s60
      %s63 = sphi 0, %s62
      %s77 = sphi 0, %s63
      %s81 = sphi 0, %s81
      %s83 = sphi 0, %s81
      %s84 = sphi 0, %s83
      %s98 = sphi 0, %s84
      %s106 = sphi 0, %s108
      %s109 = sphi 0, %s106
      %s110 = sphi 0, %s109
      %s126 = sphi 0, %s110
    $region4: #{tpu_custom_call.1} parent=1 // loop_header_branch
      %15 = sbr.rel (%p13) target = $region8
    $region5: #{tpu_custom_call.1} parent=1 // loop_body
      %s17 = ssub.s32 %s12, 1
      %s18 = ssub.s32 %s12, 2
      %s25 = sadd.s32 1, %s20
      %p26 = scmp.ge.s32.totalorder %s25, 1
      %s27 = scalar_select %p26, 0, %s25
      %s28 = sadd.s32 1, %s19
      %s29 = scalar_select %p26, %s28, %s19
      %p30 = scmp.ge.s32.totalorder %s29, 2
      %s31 = scalar_select %p30, 0, %s29
      %s32 = ssub.s32 %s19, %s31
      %s33 = ssub.s32 %s20, %s27
      %s34 = sor.u32 %s32, %s33
      %p35 = scmp.eq.s32.totalorder %s34, 0
      %s37 = sadd.s32 %s36, 1
      %s38 = scalar_select %p35, %s36, %s37
      %p41 = pneg %p35
      %p42 = scmp.eq.s32.totalorder %s12, 1
      %p43 = por %p41, %p42
      %p44 = scmp.ne.s32.totalorder %s36, %s39
      %p45 = scmp.eq.s32.totalorder %s12, 0
      %p46 = por %p44, %p45
      %p47 = scmp.ne.s32.totalorder %s36, %s39
      %p48 = scmp.eq.s32.totalorder %s17, 1
      %p49 = por %p47, %p48
      %p50 = scmp.ne.s32.totalorder %s39, %s40
      %p51 = scmp.eq.s32.totalorder %s17, 0
      %p52 = por %p50, %p51
      %p53 = scmp.ne.s32.totalorder %s39, %s40
      %p54 = scmp.eq.s32.totalorder %s18, 1
      %p55 = por %p53, %p54
      %p57 = scmp.ne.s32.totalorder %s40, %s56
      %p58 = scmp.eq.s32.totalorder %s18, 0
      %p59 = por %p57, %p58
      %s61 = sadd.s32 %s60, 1
      %p64 = scmp.eq.s32.totalorder %s12, 1
      %p65 = scmp.ne.s32.totalorder %s60, %s62
      %p66 = scmp.eq.s32.totalorder %s12, 0
      %p67 = por %p65, %p66
      %p68 = scmp.ne.s32.totalorder %s60, %s62
      %p69 = scmp.eq.s32.totalorder %s17, 1
      %p70 = por %p68, %p69
      %p71 = scmp.ne.s32.totalorder %s62, %s63
      %p72 = scmp.eq.s32.totalorder %s17, 0
      %p73 = por %p71, %p72
      %p74 = scmp.ne.s32.totalorder %s62, %s63
      %p75 = scmp.eq.s32.totalorder %s18, 1
      %p76 = por %p74, %p75
      %p78 = scmp.ne.s32.totalorder %s63, %s77
      %p79 = scmp.eq.s32.totalorder %s18, 0
      %p80 = por %p78, %p79
      %s82 = sadd.s32 %s81, 1
      %p85 = scmp.eq.s32.totalorder %s12, 1
      %p86 = scmp.ne.s32.totalorder %s81, %s83
      %p87 = scmp.eq.s32.totalorder %s12, 0
      %p88 = por %p86, %p87
      %p89 = scmp.ne.s32.totalorder %s81, %s83
      %p90 = scmp.eq.s32.totalorder %s17, 1
      %p91 = por %p89, %p90
      %p92 = scmp.ne.s32.totalorder %s83, %s84
      %p93 = scmp.eq.s32.totalorder %s17, 0
      %p94 = por %p92, %p93
      %p95 = scmp.ne.s32.totalorder %s83, %s84
      %p96 = scmp.eq.s32.totalorder %s18, 1
      %p97 = por %p95, %p96
      %p99 = scmp.ne.s32.totalorder %s84, %s98
      %p100 = scmp.eq.s32.totalorder %s18, 0
      %p101 = por %p99, %p100
      %s102 = ssub.s32 %s19, %s31
      %s103 = ssub.s32 %s20, %s27
      %s104 = sor.u32 %s102, %s103
      %p105 = scmp.eq.s32.totalorder %s104, 0
      %s107 = sadd.s32 %s106, 1
      %s108 = scalar_select %p105, %s106, %s107
      %p111 = pneg %p105
      %p112 = scmp.eq.s32.totalorder %s12, 1
      %p113 = por %p111, %p112
      %p114 = scmp.ne.s32.totalorder %s106, %s109
      %p115 = scmp.eq.s32.totalorder %s12, 0
      %p116 = por %p114, %p115
      %p117 = scmp.ne.s32.totalorder %s106, %s109
      %p118 = scmp.eq.s32.totalorder %s17, 1
      %p119 = por %p117, %p118
      %p120 = scmp.ne.s32.totalorder %s109, %s110
      %p121 = scmp.eq.s32.totalorder %s17, 0
      %p122 = por %p120, %p121
      %p123 = scmp.ne.s32.totalorder %s109, %s110
      %p124 = scmp.eq.s32.totalorder %s18, 1
      %p125 = por %p123, %p124
      %p127 = scmp.ne.s32.totalorder %s110, %s126
      %p128 = scmp.eq.s32.totalorder %s18, 0
      %p129 = por %p127, %p128
      %p130 = scmp.le.s32.totalorder 1, %s12
      %p131 = scmp.lt.s32.totalorder %s12, 3
      %p132 = pnand %p130, %p131
      %p133 = pneg %p132
      // Predicated region
      $region9: #{tpu_custom_call.1} parent=5 // pred_check
        _
      $region10: #{tpu_custom_call.1} parent=5 // pred_check_branch
        %135 = sbr.rel (%p132) target = $region12
      $region11: #{tpu_custom_call.1} parent=5 // pred_region
        %s136 = ssub.s32 %s12, 1
        // Predicated region
        $region13: #{tpu_custom_call.1} parent=11 // pred_check
          %p137 = pneg %p73
        $region14: #{tpu_custom_call.1} parent=11 // pred_check_branch
          %139 = sbr.rel (%p137) target = $region16
        $region15: #{tpu_custom_call.1} parent=11 // pred_region
          _
        $region16: #{tpu_custom_call.1} parent=11 // pred_fallthru
          _
        // Predicated region
        $region17: #{tpu_custom_call.1} parent=11 // pred_check
          %p140 = pneg %p94
        $region18: #{tpu_custom_call.1} parent=11 // pred_check_branch
          %142 = sbr.rel (%p140) target = $region20
        $region19: #{tpu_custom_call.1} parent=11 // pred_region
          _
        $region20: #{tpu_custom_call.1} parent=11 // pred_fallthru
          _
      $region12: #{tpu_custom_call.1} parent=5 // pred_fallthru
        _
      %p143 = scmp.lt.s32.totalorder %s12, 2
      // Predicated region
      $region21: #{tpu_custom_call.1} parent=5 // pred_check
        %p144 = pneg %p143
      $region22: #{tpu_custom_call.1} parent=5 // pred_check_branch
        %146 = sbr.rel (%p144) target = $region24
      $region23: #{tpu_custom_call.1} parent=5 // pred_region
        // Predicated region
        $region25: #{tpu_custom_call.1} parent=23 // pred_check
          %p147 = pneg %p46
        $region26: #{tpu_custom_call.1} parent=23 // pred_check_branch
          %149 = sbr.rel (%p147) target = $region28
        $region27: #{tpu_custom_call.1} parent=23 // pred_region
          %p150 = scmp.lt.s32.totalorder %s19, 1
          %s151 = scalar_select %p150, %s19, 1
          %p152 = scmp.lt.s32.totalorder %s20, 0
          %s153 = scalar_select %p152, %s20, 0
          %s154 = smul.addr %s153, 54
          %s155 = smul.addr %s151, 54
          %s156 = sadd.s32 %s154, %s155
          %s157 = smul.addr %s156, 4
          %s158 = scalar_lea.vmem %s0, %s157
        $region28: #{tpu_custom_call.1} parent=23 // pred_fallthru
          _
      $region24: #{tpu_custom_call.1} parent=5 // pred_fallthru
        _
      %p159 = scmp.le.s32.totalorder 1, %s12
      %p160 = scmp.lt.s32.totalorder %s12, 3
      %p161 = pnand %p159, %p160
      %p162 = pneg %p161
      // Predicated region
      $region29: #{tpu_custom_call.1} parent=5 // pred_check
        _
      $region30: #{tpu_custom_call.1} parent=5 // pred_check_branch
        %164 = sbr.rel (%p161) target = $region32
      $region31: #{tpu_custom_call.1} parent=5 // pred_region
        %s165 = ssub.s32 %s12, 1
        %p166 = scmp.lt.s32.totalorder %s21, 1
        %s167 = scalar_select %p166, %s21, 1
        %p168 = scmp.lt.s32.totalorder %s22, 0
        %s169 = scalar_select %p168, %s22, 0
        %s170 = smul.addr %s169, 54
        %s171 = smul.addr %s167, 54
        %s172 = sadd.s32 %s170, %s171
        %s173 = smul.addr %s172, 4
        %s174 = scalar_lea.vmem %s0, %s173
        %p175 = pneg %p52
        %p176 = pneg %p49
        %p177 = pneg %p73
        %p178 = pneg %p70
        %p179 = pneg %p94
        %p180 = pneg %p91
        %p181 = pneg %p122
        %p182 = pneg %p119
        %s183 = sand.u32 %s109, 1
        %s184 = scalar_lea.sflag [#allocation3], %s183
        %s185 = sand.u32 %s109, 1
        %s186 = smul.addr %s185, 32
        %s187 = scalar_lea.vmem [#allocation2], %s186
        %p188 = scmp.lt.s32.totalorder %s21, 1
        %s189 = scalar_select %p188, %s21, 1
        %p190 = scmp.lt.s32.totalorder %s22, 0
        %s191 = scalar_select %p190, %s22, 0
        %s192 = smul.addr %s191, 54
        %s193 = smul.addr %s189, 54
        %s194 = sadd.s32 %s192, %s193
        %s195 = smul.addr %s194, 4
        %s196 = scalar_lea.vmem %s0, %s195
        %s197 = smul.u32 2, %s22
        %v199 = vld [vmem:[%s196] sm:$0xf]
        %v200 = vld [vmem:[%s196 + $0x4] sm:$0xf]
        %v201 = vld [vmem:[%s196 + $0x8] sm:$0x1]
        %v202 = vld [vmem:[%s196 + $0xc] sm:$0xf]
        %v203 = vld [vmem:[%s196 + $0x10] sm:$0xf]
        %v204 = vld [vmem:[%s196 + $0x14] sm:$0x1]
        %v205 = vld [vmem:[%s196 + $0x18] sm:$0xf]
        %v206 = vld [vmem:[%s196 + $0x1c] sm:$0xf]
        %v207 = vld [vmem:[%s196 + $0x20] sm:$0x1]
        %v208 = vld [vmem:[%s196 + $0x24] sm:$0xf]
        %v209 = vld [vmem:[%s196 + $0x28] sm:$0xf]
        %v210 = vld [vmem:[%s196 + $0x2c] sm:$0x1]
        %v211 = vld [vmem:[%s196 + $0x30] sm:$0xf]
        %v212 = vld [vmem:[%s196 + $0x34] sm:$0xf]
        %v213 = vld [vmem:[%s196 + $0x38] sm:$0x1]
        %v214 = vld [vmem:[%s196 + $0x3c] sm:$0xf]
        %v215 = vld [vmem:[%s196 + $0x40] sm:$0xf]
        %v216 = vld [vmem:[%s196 + $0x44] sm:$0x1]
        %v217 = vld [vmem:[%s196 + $0x48] sm:$0xf]
        %v218 = vld [vmem:[%s196 + $0x4c] sm:$0xf]
        %v219 = vld [vmem:[%s196 + $0x50] sm:$0x1]
        %v220 = vld [vmem:[%s196 + $0x54] sm:$0xf]
        %v221 = vld [vmem:[%s196 + $0x58] sm:$0xf]
        %v222 = vld [vmem:[%s196 + $0x5c] sm:$0x1]
        %v223 = vld [vmem:[%s196 + $0x60] sm:$0xf]
        %v224 = vld [vmem:[%s196 + $0x64] sm:$0xf]
        %v225 = vld [vmem:[%s196 + $0x68] sm:$0x1]
        %v226 = vld [vmem:[%s196 + $0x6c] sm:$0xf]
        %v227 = vld [vmem:[%s196 + $0x70] sm:$0xf]
        %v228 = vld [vmem:[%s196 + $0x74] sm:$0x1]
        %v229 = vld [vmem:[%s196 + $0x78] sm:$0xf]
        %v230 = vld [vmem:[%s196 + $0x7c] sm:$0xf]
        %v231 = vld [vmem:[%s196 + $0x80] sm:$0x1]
        %v232 = vld [vmem:[%s196 + $0x84] sm:$0xf]
        %v233 = vld [vmem:[%s196 + $0x88] sm:$0xf]
        %v234 = vld [vmem:[%s196 + $0x8c] sm:$0x1]
        %v235 = vld [vmem:[%s196 + $0x90] sm:$0xf]
        %v236 = vld [vmem:[%s196 + $0x94] sm:$0xf]
        %v237 = vld [vmem:[%s196 + $0x98] sm:$0x1]
        %v238 = vld [vmem:[%s196 + $0x9c] sm:$0xf]
        %v239 = vld [vmem:[%s196 + $0xa0] sm:$0xf]
        %v240 = vld [vmem:[%s196 + $0xa4] sm:$0x1]
        %v241 = vld [vmem:[%s196 + $0xa8] sm:$0xf]
        %v242 = vld [vmem:[%s196 + $0xac] sm:$0xf]
        %v243 = vld [vmem:[%s196 + $0xb0] sm:$0x1]
        %v244 = vld [vmem:[%s196 + $0xb4] sm:$0xf]
        %v245 = vld [vmem:[%s196 + $0xb8] sm:$0xf]
        %v246 = vld [vmem:[%s196 + $0xbc] sm:$0x1]
        %v247 = vld [vmem:[%s196 + $0xc0] sm:$0xf]
        %v248 = vld [vmem:[%s196 + $0xc4] sm:$0xf]
        %v249 = vld [vmem:[%s196 + $0xc8] sm:$0x1]
        %v250 = vld [vmem:[%s196 + $0xcc] sm:$0xf]
        %v251 = vld [vmem:[%s196 + $0xd0] sm:$0xf]
        %v252 = vld [vmem:[%s196 + $0xd4] sm:$0x1]
        %v289 = vunpack.c.l.b16 %v199
        %v290 = vunpack.c.l.b16 %v200
        %v291 = vunpack.c.l.b16 %v202
        %v292 = vunpack.c.l.b16 %v203
        %v293 = vunpack.c.l.b16 %v205
        %v294 = vunpack.c.l.b16 %v206
        %v295 = vunpack.c.l.b16 %v208
        %v296 = vunpack.c.l.b16 %v209
        %v297 = vunpack.c.l.b16 %v211
        %v298 = vunpack.c.l.b16 %v212
        %v299 = vunpack.c.l.b16 %v214
        %v300 = vunpack.c.l.b16 %v215
        %v301 = vunpack.c.l.b16 %v217
        %v302 = vunpack.c.l.b16 %v218
        %v303 = vunpack.c.l.b16 %v220
        %v304 = vunpack.c.l.b16 %v221
        %v305 = vunpack.c.l.b16 %v223
        %v306 = vunpack.c.l.b16 %v224
        %v307 = vunpack.c.l.b16 %v226
        %v308 = vunpack.c.l.b16 %v227
        %v309 = vunpack.c.l.b16 %v229
        %v310 = vunpack.c.l.b16 %v230
        %v311 = vunpack.c.l.b16 %v232
        %v312 = vunpack.c.l.b16 %v233
        %v313 = vunpack.c.l.b16 %v235
        %v314 = vunpack.c.l.b16 %v236
        %v315 = vunpack.c.l.b16 %v238
        %v316 = vunpack.c.l.b16 %v239
        %v317 = vunpack.c.l.b16 %v241
        %v318 = vunpack.c.l.b16 %v242
        %v319 = vunpack.c.l.b16 %v244
        %v320 = vunpack.c.l.b16 %v245
        %v321 = vunpack.c.l.b16 %v247
        %v322 = vunpack.c.l.b16 %v248
        %v323 = vunpack.c.l.b16 %v250
        %v324 = vunpack.c.l.b16 %v251
        %v325 = vpack.c.b16 %v290, %v289
        %v326 = vpack.c.b16 %v292, %v291
        %v327 = vpack.c.b16 %v294, %v293
        %v328 = vpack.c.b16 %v296, %v295
        %v329 = vpack.c.b16 %v298, %v297
        %v330 = vpack.c.b16 %v300, %v299
        %v331 = vpack.c.b16 %v302, %v301
        %v332 = vpack.c.b16 %v304, %v303
        %v333 = vpack.c.b16 %v306, %v305
        %v334 = vpack.c.b16 %v308, %v307
        %v335 = vpack.c.b16 %v310, %v309
        %v336 = vpack.c.b16 %v312, %v311
        %v337 = vpack.c.b16 %v314, %v313
        %v338 = vpack.c.b16 %v316, %v315
        %v339 = vpack.c.b16 %v318, %v317
        %v340 = vpack.c.b16 %v320, %v319
        %v341 = vpack.c.b16 %v322, %v321
        %v342 = vpack.c.b16 %v324, %v323
        %v361 = vunpack.c.l.b16 %v201
        %v362 = vunpack.c.l.b16 %v204
        %v363 = vunpack.c.l.b16 %v207
        %v364 = vunpack.c.l.b16 %v210
        %v365 = vunpack.c.l.b16 %v213
        %v366 = vunpack.c.l.b16 %v216
        %v367 = vunpack.c.l.b16 %v219
        %v368 = vunpack.c.l.b16 %v222
        %v369 = vunpack.c.l.b16 %v225
        %v370 = vunpack.c.l.b16 %v228
        %v371 = vunpack.c.l.b16 %v231
        %v372 = vunpack.c.l.b16 %v234
        %v373 = vunpack.c.l.b16 %v237
        %v374 = vunpack.c.l.b16 %v240
        %v375 = vunpack.c.l.b16 %v243
        %v376 = vunpack.c.l.b16 %v246
        %v377 = vunpack.c.l.b16 %v249
        %v378 = vunpack.c.l.b16 %v252
        %v379 = vpack.c.b16 %v361, %v361
        %v380 = vpack.c.b16 %v362, %v362
        %v381 = vpack.c.b16 %v363, %v363
        %v382 = vpack.c.b16 %v364, %v364
        %v383 = vpack.c.b16 %v365, %v365
        %v384 = vpack.c.b16 %v366, %v366
        %v385 = vpack.c.b16 %v367, %v367
        %v386 = vpack.c.b16 %v368, %v368
        %v387 = vpack.c.b16 %v369, %v369
        %v388 = vpack.c.b16 %v370, %v370
        %v389 = vpack.c.b16 %v371, %v371
        %v390 = vpack.c.b16 %v372, %v372
        %v391 = vpack.c.b16 %v373, %v373
        %v392 = vpack.c.b16 %v374, %v374
        %v393 = vpack.c.b16 %v375, %v375
        %v394 = vpack.c.b16 %v376, %v376
        %v395 = vpack.c.b16 %v377, %v377
        %v396 = vpack.c.b16 %v378, %v378
        %vm397 = vsmask.f32 7424
        %v399 = vshrl.u32 %v325, 16
        %v401 = vshll.u32 %v325, 16
        %v403 = vrot.slane %v401, 1
        %v404 = vor.u32 %v399, %v403
        %v406 = vshll.u32 %v379, 16
        %v408 = vrot.slane %v406, 1
        %v409 = vsel %vm397, %v404, %v408
        %v411 = vshrl.u32 %v326, 16
        %v413 = vshll.u32 %v326, 16
        %v415 = vrot.slane %v413, 1
        %v416 = vor.u32 %v411, %v415
        %v418 = vshll.u32 %v380, 16
        %v420 = vrot.slane %v418, 1
        %v421 = vsel %vm397, %v416, %v420
        %v423 = vshrl.u32 %v327, 16
        %v425 = vshll.u32 %v327, 16
        %v427 = vrot.slane %v425, 1
        %v428 = vor.u32 %v423, %v427
        %v430 = vshll.u32 %v381, 16
        %v432 = vrot.slane %v430, 1
        %v433 = vsel %vm397, %v428, %v432
        %v435 = vshrl.u32 %v328, 16
        %v437 = vshll.u32 %v328, 16
        %v439 = vrot.slane %v437, 1
        %v440 = vor.u32 %v435, %v439
        %v442 = vshll.u32 %v382, 16
        %v444 = vrot.slane %v442, 1
        %v445 = vsel %vm397, %v440, %v444
        %v447 = vshrl.u32 %v329, 16
        %v449 = vshll.u32 %v329, 16
        %v451 = vrot.slane %v449, 1
        %v452 = vor.u32 %v447, %v451
        %v454 = vshll.u32 %v383, 16
        %v456 = vrot.slane %v454, 1
        %v457 = vsel %vm397, %v452, %v456
        %v459 = vshrl.u32 %v330, 16
        %v461 = vshll.u32 %v330, 16
        %v463 = vrot.slane %v461, 1
        %v464 = vor.u32 %v459, %v463
        %v466 = vshll.u32 %v384, 16
        %v468 = vrot.slane %v466, 1
        %v469 = vsel %vm397, %v464, %v468
        %v471 = vshrl.u32 %v331, 16
        %v473 = vshll.u32 %v331, 16
        %v475 = vrot.slane %v473, 1
        %v476 = vor.u32 %v471, %v475
        %v478 = vshll.u32 %v385, 16
        %v480 = vrot.slane %v478, 1
        %v481 = vsel %vm397, %v476, %v480
        %v483 = vshrl.u32 %v332, 16
        %v485 = vshll.u32 %v332, 16
        %v487 = vrot.slane %v485, 1
        %v488 = vor.u32 %v483, %v487
        %v490 = vshll.u32 %v386, 16
        %v492 = vrot.slane %v490, 1
        %v493 = vsel %vm397, %v488, %v492
        %v495 = vshrl.u32 %v333, 16
        %v497 = vshll.u32 %v333, 16
        %v499 = vrot.slane %v497, 1
        %v500 = vor.u32 %v495, %v499
        %v502 = vshll.u32 %v387, 16
        %v504 = vrot.slane %v502, 1
        %v505 = vsel %vm397, %v500, %v504
        %v507 = vshrl.u32 %v334, 16
        %v509 = vshll.u32 %v334, 16
        %v511 = vrot.slane %v509, 1
        %v512 = vor.u32 %v507, %v511
        %v514 = vshll.u32 %v388, 16
        %v516 = vrot.slane %v514, 1
        %v517 = vsel %vm397, %v512, %v516
        %v519 = vshrl.u32 %v335, 16
        %v521 = vshll.u32 %v335, 16
        %v523 = vrot.slane %v521, 1
        %v524 = vor.u32 %v519, %v523
        %v526 = vshll.u32 %v389, 16
        %v528 = vrot.slane %v526, 1
        %v529 = vsel %vm397, %v524, %v528
        %v531 = vshrl.u32 %v336, 16
        %v533 = vshll.u32 %v336, 16
        %v535 = vrot.slane %v533, 1
        %v536 = vor.u32 %v531, %v535
        %v538 = vshll.u32 %v390, 16
        %v540 = vrot.slane %v538, 1
        %v541 = vsel %vm397, %v536, %v540
        %v543 = vshrl.u32 %v337, 16
        %v545 = vshll.u32 %v337, 16
        %v547 = vrot.slane %v545, 1
        %v548 = vor.u32 %v543, %v547
        %v550 = vshll.u32 %v391, 16
        %v552 = vrot.slane %v550, 1
        %v553 = vsel %vm397, %v548, %v552
        %v555 = vshrl.u32 %v338, 16
        %v557 = vshll.u32 %v338, 16
        %v559 = vrot.slane %v557, 1
        %v560 = vor.u32 %v555, %v559
        %v562 = vshll.u32 %v392, 16
        %v564 = vrot.slane %v562, 1
        %v565 = vsel %vm397, %v560, %v564
        %v567 = vshrl.u32 %v339, 16
        %v569 = vshll.u32 %v339, 16
        %v571 = vrot.slane %v569, 1
        %v572 = vor.u32 %v567, %v571
        %v574 = vshll.u32 %v393, 16
        %v576 = vrot.slane %v574, 1
        %v577 = vsel %vm397, %v572, %v576
        %v579 = vshrl.u32 %v340, 16
        %v581 = vshll.u32 %v340, 16
        %v583 = vrot.slane %v581, 1
        %v584 = vor.u32 %v579, %v583
        %v586 = vshll.u32 %v394, 16
        %v588 = vrot.slane %v586, 1
        %v589 = vsel %vm397, %v584, %v588
        %v591 = vshrl.u32 %v341, 16
        %v593 = vshll.u32 %v341, 16
        %v595 = vrot.slane %v593, 1
        %v596 = vor.u32 %v591, %v595
        %v598 = vshll.u32 %v395, 16
        %v600 = vrot.slane %v598, 1
        %v601 = vsel %vm397, %v596, %v600
        %v603 = vshrl.u32 %v342, 16
        %v605 = vshll.u32 %v342, 16
        %v607 = vrot.slane %v605, 1
        %v608 = vor.u32 %v603, %v607
        %v610 = vshll.u32 %v396, 16
        %v612 = vrot.slane %v610, 1
        %v613 = vsel %vm397, %v608, %v612
        %614 = vrot.lane.b32.xlu0 %v409, 4
        %v615 = vpop.permute.xlu0 %614
        %616 = vrot.lane.b32.xlu0 %v421, 4
        %v617 = vpop.permute.xlu0 %616
        %618 = vrot.lane.b32.xlu0 %v433, 4
        %v619 = vpop.permute.xlu0 %618
        %620 = vrot.lane.b32.xlu0 %v445, 4
        %v621 = vpop.permute.xlu0 %620
        %622 = vrot.lane.b32.xlu0 %v457, 4
        %v623 = vpop.permute.xlu0 %622
        %624 = vrot.lane.b32.xlu0 %v469, 4
        %v625 = vpop.permute.xlu0 %624
        %626 = vrot.lane.b32.xlu0 %v481, 4
        %v627 = vpop.permute.xlu0 %626
        %628 = vrot.lane.b32.xlu0 %v493, 4
        %v629 = vpop.permute.xlu0 %628
        %630 = vrot.lane.b32.xlu0 %v505, 4
        %v631 = vpop.permute.xlu0 %630
        %632 = vrot.lane.b32.xlu0 %v517, 4
        %v633 = vpop.permute.xlu0 %632
        %634 = vrot.lane.b32.xlu0 %v529, 4
        %v635 = vpop.permute.xlu0 %634
        %636 = vrot.lane.b32.xlu0 %v541, 4
        %v637 = vpop.permute.xlu0 %636
        %638 = vrot.lane.b32.xlu0 %v553, 4
        %v639 = vpop.permute.xlu0 %638
        %640 = vrot.lane.b32.xlu0 %v565, 4
        %v641 = vpop.permute.xlu0 %640
        %642 = vrot.lane.b32.xlu0 %v577, 4
        %v643 = vpop.permute.xlu0 %642
        %644 = vrot.lane.b32.xlu0 %v589, 4
        %v645 = vpop.permute.xlu0 %644
        %646 = vrot.lane.b32.xlu0 %v601, 4
        %v647 = vpop.permute.xlu0 %646
        %648 = vrot.lane.b32.xlu0 %v613, 4
        %v649 = vpop.permute.xlu0 %648
        %vm650 = vcmask 1046528
        %v651 = vrot.slane %v325, 1
        %v652 = vrot.slane %v379, 1
        %v653 = vsel %vm650, %v651, %v652
        %v654 = vrot.slane %v326, 1
        %v655 = vrot.slane %v380, 1
        %v656 = vsel %vm650, %v654, %v655
        %v657 = vrot.slane %v327, 1
        %v658 = vrot.slane %v381, 1
        %v659 = vsel %vm650, %v657, %v658
        %v660 = vrot.slane %v328, 1
        %v661 = vrot.slane %v382, 1
        %v662 = vsel %vm650, %v660, %v661
        %v663 = vrot.slane %v329, 1
        %v664 = vrot.slane %v383, 1
        %v665 = vsel %vm650, %v663, %v664
        %v666 = vrot.slane %v330, 1
        %v667 = vrot.slane %v384, 1
        %v668 = vsel %vm650, %v666, %v667
        %v669 = vrot.slane %v331, 1
        %v670 = vrot.slane %v385, 1
        %v671 = vsel %vm650, %v669, %v670
        %v672 = vrot.slane %v332, 1
        %v673 = vrot.slane %v386, 1
        %v674 = vsel %vm650, %v672, %v673
        %v675 = vrot.slane %v333, 1
        %v676 = vrot.slane %v387, 1
        %v677 = vsel %vm650, %v675, %v676
        %v678 = vrot.slane %v334, 1
        %v679 = vrot.slane %v388, 1
        %v680 = vsel %vm650, %v678, %v679
        %v681 = vrot.slane %v335, 1
        %v682 = vrot.slane %v389, 1
        %v683 = vsel %vm650, %v681, %v682
        %v684 = vrot.slane %v336, 1
        %v685 = vrot.slane %v390, 1
        %v686 = vsel %vm650, %v684, %v685
        %v687 = vrot.slane %v337, 1
        %v688 = vrot.slane %v391, 1
        %v689 = vsel %vm650, %v687, %v688
        %v690 = vrot.slane %v338, 1
        %v691 = vrot.slane %v392, 1
        %v692 = vsel %vm650, %v690, %v691
        %v693 = vrot.slane %v339, 1
        %v694 = vrot.slane %v393, 1
        %v695 = vsel %vm650, %v693, %v694
        %v696 = vrot.slane %v340, 1
        %v697 = vrot.slane %v394, 1
        %v698 = vsel %vm650, %v696, %v697
        %v699 = vrot.slane %v341, 1
        %v700 = vrot.slane %v395, 1
        %v701 = vsel %vm650, %v699, %v700
        %v702 = vrot.slane %v342, 1
        %v703 = vrot.slane %v396, 1
        %v704 = vsel %vm650, %v702, %v703
        %705 = vrot.lane.b32.xlu0 %v653, 8
        %v706 = vpop.permute.xlu0 %705
        %707 = vrot.lane.b32.xlu0 %v656, 8
        %v708 = vpop.permute.xlu0 %707
        %709 = vrot.lane.b32.xlu0 %v659, 8
        %v710 = vpop.permute.xlu0 %709
        %711 = vrot.lane.b32.xlu0 %v662, 8
        %v712 = vpop.permute.xlu0 %711
        %713 = vrot.lane.b32.xlu0 %v665, 8
        %v714 = vpop.permute.xlu0 %713
        %715 = vrot.lane.b32.xlu0 %v668, 8
        %v716 = vpop.permute.xlu0 %715
        %717 = vrot.lane.b32.xlu0 %v671, 8
        %v718 = vpop.permute.xlu0 %717
        %719 = vrot.lane.b32.xlu0 %v674, 8
        %v720 = vpop.permute.xlu0 %719
        %721 = vrot.lane.b32.xlu0 %v677, 8
        %v722 = vpop.permute.xlu0 %721
        %723 = vrot.lane.b32.xlu0 %v680, 8
        %v724 = vpop.permute.xlu0 %723
        %725 = vrot.lane.b32.xlu0 %v683, 8
        %v726 = vpop.permute.xlu0 %725
        %727 = vrot.lane.b32.xlu0 %v686, 8
        %v728 = vpop.permute.xlu0 %727
        %729 = vrot.lane.b32.xlu0 %v689, 8
        %v730 = vpop.permute.xlu0 %729
        %731 = vrot.lane.b32.xlu0 %v692, 8
        %v732 = vpop.permute.xlu0 %731
        %733 = vrot.lane.b32.xlu0 %v695, 8
        %v734 = vpop.permute.xlu0 %733
        %735 = vrot.lane.b32.xlu0 %v698, 8
        %v736 = vpop.permute.xlu0 %735
        %737 = vrot.lane.b32.xlu0 %v701, 8
        %v738 = vpop.permute.xlu0 %737
        %739 = vrot.lane.b32.xlu0 %v704, 8
        %v740 = vpop.permute.xlu0 %739
        %vm741 = vcmask 31744
        %v743 = vsel %vm741, %v325, %v615
        %v745 = vsel %vm741, %v326, %v617
        %v747 = vsel %vm741, %v327, %v619
        %v749 = vsel %vm741, %v328, %v621
        %v751 = vsel %vm741, %v329, %v623
        %v753 = vsel %vm741, %v330, %v625
        %v755 = vsel %vm741, %v331, %v627
        %v757 = vsel %vm741, %v332, %v629
        %v759 = vsel %vm741, %v333, %v631
        %v761 = vsel %vm741, %v334, %v633
        %v763 = vsel %vm741, %v335, %v635
        %v765 = vsel %vm741, %v336, %v637
        %v767 = vsel %vm741, %v337, %v639
        %v769 = vsel %vm741, %v338, %v641
        %v771 = vsel %vm741, %v339, %v643
        %v773 = vsel %vm741, %v340, %v645
        %v775 = vsel %vm741, %v341, %v647
        %v777 = vsel %vm741, %v342, %v649
        %vm778 = vcmask 64512
        %v780 = vsel %vm778, %v743, %v706
        %v782 = vsel %vm778, %v745, %v708
        %v784 = vsel %vm778, %v747, %v710
        %v786 = vsel %vm778, %v749, %v712
        %v788 = vsel %vm778, %v751, %v714
        %v790 = vsel %vm778, %v753, %v716
        %v792 = vsel %vm778, %v755, %v718
        %v794 = vsel %vm778, %v757, %v720
        %v796 = vsel %vm778, %v759, %v722
        %v798 = vsel %vm778, %v761, %v724
        %v800 = vsel %vm778, %v763, %v726
        %v802 = vsel %vm778, %v765, %v728
        %v804 = vsel %vm778, %v767, %v730
        %v806 = vsel %vm778, %v769, %v732
        %v808 = vsel %vm778, %v771, %v734
        %v810 = vsel %vm778, %v773, %v736
        %v812 = vsel %vm778, %v775, %v738
        %v814 = vsel %vm778, %v777, %v740
        %v815 = vld [vmem:[%s1] sm:$0xf]
        %v816 = vld [vmem:[%s1 + $0x4] sm:$0xf]
        %v817 = vld [vmem:[%s1 + $0x8] sm:$0xf]
        %v818 = vld [vmem:[%s1 + $0xc] sm:$0xf]
        %s819 = scalar_lea.vmem %s1, 16
        %v820 = vld [vmem:[%s819] sm:$0xf]
        %v821 = vld [vmem:[%s819 + $0x4] sm:$0xf]
        %v822 = vld [vmem:[%s819 + $0x8] sm:$0xf]
        %v823 = vld [vmem:[%s819 + $0xc] sm:$0xf]
        %v828 = vunpack.c.l.b16 %v820
        %v829 = vunpack.c.l.b16 %v821
        %v830 = vunpack.c.l.b16 %v822
        %v831 = vunpack.c.l.b16 %v823
        %v832 = vpack.c.b16 %v829, %v828
        %v833 = vpack.c.b16 %v831, %v830
        %vm834 = vcmask 97280
        %v836 = vsel %vm834, %v832, 0
        %v839 = vsel %vm834, %v833, 0
        %v841 = vsel %vm834, %v782, 0
        %v843 = vsel %vm834, %v784, 0
        %v845 = vsel %vm834, %v786, 0
        %v847 = vsel %vm834, %v788, 0
        %v849 = vsel %vm834, %v790, 0
        %v851 = vsel %vm834, %v792, 0
        %v853 = vsel %vm834, %v794, 0
        %v855 = vsel %vm834, %v796, 0
        %v857 = vsel %vm834, %v798, 0
        %v859 = vsel %vm834, %v800, 0
        %v861 = vsel %vm834, %v802, 0
        %v863 = vsel %vm834, %v804, 0
        %v865 = vsel %vm834, %v806, 0
        %v867 = vsel %vm834, %v808, 0
        %v869 = vsel %vm834, %v810, 0
        %v871 = vsel %vm834, %v812, 0
        %873 = vmatprep.subr.bf16.mxu0 0
        %874 = vmatpush1.bf16.xpose.msra.mxu0 %v841
        %875 = vmatprep.subr.bf16.mxu0 0
        %876 = vmatpush1.bf16.xpose.msra.mxu0 %v843
        %877 = vmatprep.subr.bf16.mxu0 0
        %878 = vmatpush1.bf16.xpose.msra.mxu0 %v845
        %879 = vmatprep.subr.bf16.mxu0 0
        %880 = vmatpush1.bf16.xpose.msra.mxu0 %v847
        %881 = vmatprep.subr.bf16.mxu0 0
        %882 = vmatpush1.bf16.xpose.msra.mxu0 %v849
        %883 = vmatprep.subr.bf16.mxu0 0
        %884 = vmatpush1.bf16.xpose.msra.mxu0 %v851
        %885 = vmatprep.subr.bf16.mxu0 0
        %886 = vmatpush1.bf16.xpose.msra.mxu0 %v853
        %887 = vmatprep.subr.bf16.mxu0 0
        %888 = vmatpush1.bf16.xpose.msra.mxu0 %v855
        %889 = vmatprep.subr.bf16.mxu0 0
        %890 = vmatpush1.bf16.xpose.msra.mxu0 %v857
        %891 = vmatprep.subr.bf16.mxu0 0
        %892 = vmatpush1.bf16.xpose.msra.mxu0 %v859
        %893 = vmatprep.subr.bf16.mxu0 0
        %894 = vmatpush1.bf16.xpose.msra.mxu0 %v861
        %895 = vmatprep.subr.bf16.mxu0 0
        %896 = vmatpush1.bf16.xpose.msra.mxu0 %v863
        %897 = vmatprep.subr.bf16.mxu0 0
        %898 = vmatpush1.bf16.xpose.msra.mxu0 %v865
        %899 = vmatprep.subr.bf16.mxu0 0
        %900 = vmatpush1.bf16.xpose.msra.mxu0 %v867
        %901 = vmatprep.subr.bf16.mxu0 0
        %902 = vmatpush1.bf16.xpose.msra.mxu0 %v869
        %903 = vmatprep.subr.bf16.mxu0 0
        %904 = vmatpush1.bf16.xpose.msra.mxu0 %v871
        %905 = vmatprep.mubr.bf16.mxu0 0
        %906 = vmatmul.mubr.bf16.gmra.mrb[0].mxu0 %v836
        %v907 = vpop.f32.mrb[0].mxu0
        %v908 = vadd.f32 0.0, %v907
        %v909 = vpop.f32.mrb[0].mxu0
        %v910 = vadd.f32 0.0, %v909
        %v911 = vpop.f32.mrb[0].mxu0
        %v912 = vadd.f32 0.0, %v911
        %v913 = vpop.f32.mrb[0].mxu0
        %v914 = vadd.f32 0.0, %v913
        %915 = vmatprep.mubr.bf16.mxu0 0
        %916 = vmatmul.mubr.bf16.gmra.mrb[0].mxu0 %v839
        %v917 = vpop.f32.mrb[0].mxu0
        %v918 = vadd.f32 0.0, %v917
        %v919 = vpop.f32.mrb[0].mxu0
        %v920 = vadd.f32 0.0, %v919
        %v921 = vpop.f32.mrb[0].mxu0
        %v922 = vadd.f32 0.0, %v921
        %v923 = vpop.f32.mrb[0].mxu0
        %v924 = vadd.f32 0.0, %v923
        %925 = vdwg.mxu0
        %v930 = vunpack.c.l.b16 %v815
        %v931 = vunpack.c.l.b16 %v816
        %v932 = vunpack.c.l.b16 %v817
        %v933 = vunpack.c.l.b16 %v818
        %v934 = vpack.c.b16 %v931, %v930
        %v935 = vpack.c.b16 %v933, %v932
        %v937 = vsel %vm834, %v934, 0
        %v940 = vsel %vm834, %v935, 0
        %v942 = vsel %vm834, %v780, 0
        %944 = vmatprep.subr.bf16.mxu0 0
        %945 = vmatpush1.bf16.xpose.msra.mxu0 %v942
        %946 = vmatprep.subr.bf16.mxu0 0
        %947 = vmatpush1.bf16.xpose.msra.mxu0 %v841
        %948 = vmatprep.subr.bf16.mxu0 0
        %949 = vmatpush1.bf16.xpose.msra.mxu0 %v843
        %950 = vmatprep.subr.bf16.mxu0 0
        %951 = vmatpush1.bf16.xpose.msra.mxu0 %v845
        %952 = vmatprep.subr.bf16.mxu0 0
        %953 = vmatpush1.bf16.xpose.msra.mxu0 %v847
        %954 = vmatprep.subr.bf16.mxu0 0
        %955 = vmatpush1.bf16.xpose.msra.mxu0 %v849
        %956 = vmatprep.subr.bf16.mxu0 0
        %957 = vmatpush1.bf16.xpose.msra.mxu0 %v851
        %958 = vmatprep.subr.bf16.mxu0 0
        %959 = vmatpush1.bf16.xpose.msra.mxu0 %v853
        %960 = vmatprep.subr.bf16.mxu0 0
        %961 = vmatpush1.bf16.xpose.msra.mxu0 %v855
        %962 = vmatprep.subr.bf16.mxu0 0
        %963 = vmatpush1.bf16.xpose.msra.mxu0 %v857
        %964 = vmatprep.subr.bf16.mxu0 0
        %965 = vmatpush1.bf16.xpose.msra.mxu0 %v859
        %966 = vmatprep.subr.bf16.mxu0 0
        %967 = vmatpush1.bf16.xpose.msra.mxu0 %v861
        %968 = vmatprep.subr.bf16.mxu0 0
        %969 = vmatpush1.bf16.xpose.msra.mxu0 %v863
        %970 = vmatprep.subr.bf16.mxu0 0
        %971 = vmatpush1.bf16.xpose.msra.mxu0 %v865
        %972 = vmatprep.subr.bf16.mxu0 0
        %973 = vmatpush1.bf16.xpose.msra.mxu0 %v867
        %974 = vmatprep.subr.bf16.mxu0 0
        %975 = vmatpush1.bf16.xpose.msra.mxu0 %v869
        %976 = vmatprep.mubr.bf16.mxu0 0
        %977 = vmatmul.mubr.bf16.gmra.mrb[0].mxu0 %v937
        %v978 = vpop.f32.mrb[0].mxu0
        %v979 = vadd.f32 %v908, %v978
        %v980 = vpop.f32.mrb[0].mxu0
        %v981 = vadd.f32 %v910, %v980
        %v982 = vpop.f32.mrb[0].mxu0
        %v983 = vadd.f32 %v912, %v982
        %v984 = vpop.f32.mrb[0].mxu0
        %v985 = vadd.f32 %v914, %v984
        %986 = vmatprep.mubr.bf16.mxu0 0
        %987 = vmatmul.mubr.bf16.gmra.mrb[0].mxu0 %v940
        %v988 = vpop.f32.mrb[0].mxu0
        %v989 = vadd.f32 %v918, %v988
        %v990 = vpop.f32.mrb[0].mxu0
        %v991 = vadd.f32 %v920, %v990
        %v992 = vpop.f32.mrb[0].mxu0
        %v993 = vadd.f32 %v922, %v992
        %v994 = vpop.f32.mrb[0].mxu0
        %v995 = vadd.f32 %v924, %v994
        %996 = vdwg.mxu0
        %s997 = scalar_lea.vmem %s1, 32
        %v998 = vld [vmem:[%s997] sm:$0xf]
        %v999 = vld [vmem:[%s997 + $0x4] sm:$0xf]
        %v1000 = vld [vmem:[%s997 + $0x8] sm:$0xf]
        %v1001 = vld [vmem:[%s997 + $0xc] sm:$0xf]
        %v1006 = vunpack.c.l.b16 %v998
        %v1007 = vunpack.c.l.b16 %v999
        %v1008 = vunpack.c.l.b16 %v1000
        %v1009 = vunpack.c.l.b16 %v1001
        %v1010 = vpack.c.b16 %v1007, %v1006
        %v1011 = vpack.c.b16 %v1009, %v1008
        %v1013 = vsel %vm834, %v1010, 0
        %v1016 = vsel %vm834, %v1011, 0
        %v1018 = vsel %vm834, %v814, 0
        %1020 = vmatprep.subr.bf16.mxu0 0
        %1021 = vmatpush1.bf16.xpose.msra.mxu0 %v843
        %1022 = vmatprep.subr.bf16.mxu0 0
        %1023 = vmatpush1.bf16.xpose.msra.mxu0 %v845
        %1024 = vmatprep.subr.bf16.mxu0 0
        %1025 = vmatpush1.bf16.xpose.msra.mxu0 %v847
        %1026 = vmatprep.subr.bf16.mxu0 0
        %1027 = vmatpush1.bf16.xpose.msra.mxu0 %v849
        %1028 = vmatprep.subr.bf16.mxu0 0
        %1029 = vmatpush1.bf16.xpose.msra.mxu0 %v851
        %1030 = vmatprep.subr.bf16.mxu0 0
        %1031 = vmatpush1.bf16.xpose.msra.mxu0 %v853
        %1032 = vmatprep.subr.bf16.mxu0 0
        %1033 = vmatpush1.bf16.xpose.msra.mxu0 %v855
        %1034 = vmatprep.subr.bf16.mxu0 0
        %1035 = vmatpush1.bf16.xpose.msra.mxu0 %v857
        %1036 = vmatprep.subr.bf16.mxu0 0
        %1037 = vmatpush1.bf16.xpose.msra.mxu0 %v859
        %1038 = vmatprep.subr.bf16.mxu0 0
        %1039 = vmatpush1.bf16.xpose.msra.mxu0 %v861
        %1040 = vmatprep.subr.bf16.mxu0 0
        %1041 = vmatpush1.bf16.xpose.msra.mxu0 %v863
        %1042 = vmatprep.subr.bf16.mxu0 0
        %1043 = vmatpush1.bf16.xpose.msra.mxu0 %v865
        %1044 = vmatprep.subr.bf16.mxu0 0
        %1045 = vmatpush1.bf16.xpose.msra.mxu0 %v867
        %1046 = vmatprep.subr.bf16.mxu0 0
        %1047 = vmatpush1.bf16.xpose.msra.mxu0 %v869
        %1048 = vmatprep.subr.bf16.mxu0 0
        %1049 = vmatpush1.bf16.xpose.msra.mxu0 %v871
        %1050 = vmatprep.subr.bf16.mxu0 0
        %1051 = vmatpush1.bf16.xpose.msra.mxu0 %v1018
        %1052 = vmatprep.mubr.bf16.mxu0 0
        %1053 = vmatmul.mubr.bf16.gmra.mrb[0].mxu0 %v1013
        %v1054 = vpop.f32.mrb[0].mxu0
        %v1055 = vadd.f32 0.0, %v1054
        %v1056 = vpop.f32.mrb[0].mxu0
        %v1057 = vadd.f32 0.0, %v1056
        %v1058 = vpop.f32.mrb[0].mxu0
        %v1059 = vadd.f32 0.0, %v1058
        %v1060 = vpop.f32.mrb[0].mxu0
        %v1061 = vadd.f32 0.0, %v1060
        %1062 = vmatprep.mubr.bf16.mxu0 0
        %1063 = vmatmul.mubr.bf16.gmra.mrb[0].mxu0 %v1016
        %v1064 = vpop.f32.mrb[0].mxu0
        %v1065 = vadd.f32 0.0, %v1064
        %v1066 = vpop.f32.mrb[0].mxu0
        %v1067 = vadd.f32 0.0, %v1066
        %v1068 = vpop.f32.mrb[0].mxu0
        %v1069 = vadd.f32 0.0, %v1068
        %v1070 = vpop.f32.mrb[0].mxu0
        %v1071 = vadd.f32 0.0, %v1070
        %1072 = vdwg.mxu0
        %v1073 = vadd.f32 %v979, %v1055
        %v1074 = vadd.f32 %v981, %v1057
        %v1075 = vadd.f32 %v983, %v1059
        %v1076 = vadd.f32 %v985, %v1061
        %v1077 = vadd.f32 %v989, %v1065
        %v1078 = vadd.f32 %v991, %v1067
        %v1079 = vadd.f32 %v993, %v1069
        %v1080 = vadd.f32 %v995, %v1071
        %v1081 = vld [vmem:[%s2] sm:$0xff]
        %v1082 = vld [vmem:[%s2 + $0x8] sm:$0xff]
        %v1083 = vld [vmem:[%s2 + $0x10] sm:$0xff]
        %v1084 = vld [vmem:[%s2 + $0x18] sm:$0xff]
        %1086 = vset.pattern.permute.xlu0 0
        %1087 = vperm.xlu0 %1086, %v1081
        %v1088 = vpop.permute.xlu0 %1087
        %1091 = vset.pattern.permute.xlu0 0
        %1092 = vperm.xlu0 %1091, %v1082
        %v1093 = vpop.permute.xlu0 %1092
        %1096 = vset.pattern.permute.xlu0 0
        %1097 = vperm.xlu0 %1096, %v1083
        %v1098 = vpop.permute.xlu0 %1097
        %1101 = vset.pattern.permute.xlu0 0
        %1102 = vperm.xlu0 %1101, %v1084
        %v1103 = vpop.permute.xlu0 %1102
        %v1105 = vadd.f32 %v1073, %v1088
        %v1106 = vadd.f32 %v1074, %v1088
        %v1107 = vadd.f32 %v1075, %v1093
        %v1108 = vadd.f32 %v1076, %v1093
        %v1109 = vadd.f32 %v1077, %v1098
        %v1110 = vadd.f32 %v1078, %v1098
        %v1111 = vadd.f32 %v1079, %v1103
        %v1112 = vadd.f32 %v1080, %v1103
        %v1113 = vpack.c.bf16 %v1107, %v1105
        %v1114 = vpack.c.bf16 %v1108, %v1106
        %v1115 = vpack.c.bf16 %v1111, %v1109
        %v1116 = vpack.c.bf16 %v1112, %v1110
        %v1121 = vunpack.c.l.b16 %v1113
        %v1122 = vunpack.c.l.b16 %v1114
        %v1123 = vunpack.c.h.b16 %v1113
        %v1124 = vunpack.c.h.b16 %v1114
        %v1125 = vunpack.c.l.b16 %v1115
        %v1126 = vunpack.c.l.b16 %v1116
        %v1127 = vunpack.c.h.b16 %v1115
        %v1128 = vunpack.c.h.b16 %v1116
        %v1129 = vpack.c.b16 %v1122, %v1121
        %v1130 = vpack.c.b16 %v1124, %v1123
        %v1131 = vpack.c.b16 %v1126, %v1125
        %v1132 = vpack.c.b16 %v1128, %v1127
        %1137 = vst [vmem:[%s187] sm:$0xff] %v1129
        %1138 = vst [vmem:[%s187 + $0x8] sm:$0xff] %v1130
        %1139 = vst [vmem:[%s187 + $0x10] sm:$0xff] %v1131
        %1140 = vst [vmem:[%s187 + $0x18] sm:$0xff] %v1132
        %s1141 = sand.u32 %s109, 1
        %s1142 = scalar_lea.sflag [#allocation3], %s1141
        %s1143 = sand.u32 %s109, 1
        %s1144 = smul.addr %s1143, 32
        %s1145 = scalar_lea.vmem [#allocation2], %s1144
        // Predicated region
        $region33: #{tpu_custom_call.1} parent=31 // pred_check
          %p1146 = pneg %p119
        $region34: #{tpu_custom_call.1} parent=31 // pred_check_branch
          %1148 = sbr.rel (%p1146) target = $region36
        $region35: #{tpu_custom_call.1} parent=31 // pred_region
          %s1149 = smul.u32 2, %s22
          %s1151 = ssub.s32 512, 512
          %1152 = vsyncadd %s1142, %s1151
          %s1153 = smul.addr %s21, 8
          %s1154 = sadd.s32 %s1149, %s1153
          %s1155 = smul.addr %s1154, 64
          %s1156 = scalar_lea.hbm %s3, %s1155
          %s1157 = sshll.u32 %s1145, 4
          %s1158 = int_to_ptr.vmem [resolvable:$true] %s1157
          %1163 = dma.vmem_to_hbm [thread:$0]  %s1158, 512, %s1156, %s1142, 128, 128, 8
        $region36: #{tpu_custom_call.1} parent=31 // pred_fallthru
          _
      $region32: #{tpu_custom_call.1} parent=5 // pred_fallthru
        _
      %p1164 = scmp.le.s32.totalorder 2, %s12
      // Predicated region
      $region37: #{tpu_custom_call.1} parent=5 // pred_check
        %p1165 = pneg %p1164
      $region38: #{tpu_custom_call.1} parent=5 // pred_check_branch
        %1167 = sbr.rel (%p1165) target = $region40
      $region39: #{tpu_custom_call.1} parent=5 // pred_region
        %s1168 = ssub.s32 %s12, 2
        // Predicated region
        $region41: #{tpu_custom_call.1} parent=39 // pred_check
          %p1169 = pneg %p125
        $region42: #{tpu_custom_call.1} parent=39 // pred_check_branch
          %1171 = sbr.rel (%p1169) target = $region44
        $region43: #{tpu_custom_call.1} parent=39 // pred_region
          %s1172 = sand.u32 %s110, 1
          %s1173 = scalar_lea.sflag [#allocation3], %s1172
          %s1174 = sand.u32 %s110, 1
          %s1175 = smul.addr %s1174, 32
          %s1176 = scalar_lea.vmem [#allocation2], %s1175
          %1177 = dma.done %s1173, 512
        $region44: #{tpu_custom_call.1} parent=39 // pred_fallthru
          _
      $region40: #{tpu_custom_call.1} parent=5 // pred_fallthru
        _
    $region6: #{tpu_custom_call.1} parent=1 // loop_footer
      %s16 = sadd.s32 1, %s12
    $region7: #{tpu_custom_call.1} parent=1 // loop_footer_branch
      %11 = sbr.rel target = $region3
    $region8: #{tpu_custom_call.1} parent=1 // loop_exit
      _
    %1178 = vsyncpa [#allocation3], 1
    %s1179 = scalar_lea.sflag [#allocation3], 1
    %1180 = vsyncpa %s1179, 1

</llo_original>
